<compile_context>
chip_gen: v7x
topology: tpu7x:2x2x1
jax: 0.10.0
libtpu: 0.0.40
codegen_flags: <defaults>
</compile_context>

<pallas_src>
import functools

import jax
import jax.numpy as jnp
import numpy as np
from jax.experimental import pallas as pl
from jax.experimental.pallas import tpu as pltpu

EPS = 1e-5


def _conv_block_kernel(x_ref, pos_ref, wcat_ref, scat_ref, bcat_ref,
                       w2_ref, s2_ref, b2_ref, w3_ref, s3_ref, b3_ref,
                       o_ref, *, ho, wo):
    # x_ref:    (B, Cin, P)   bf16 input pixels (P = ho*wo on the lane axis)
    # pos_ref:  (2, P)        int32 [row, col] index of every flattened pixel
    # wcat_ref: (F1+F3, Cin)  bf16 fused [conv1 | shortcut] 1x1 weights
    # w2_ref:   (F2, 9*F1)    bf16 3x3 conv weights in tap-major im2col layout
    # w3_ref:   (F3, F2)      bf16 final 1x1 conv weights
    # s*/b*:    (F, 1)        f32 folded BatchNorm scale / bias
    # o_ref:    (B, F3, P)    f32 output (lane-dense: P lanes)
    B, _, P = x_ref.shape
    F1 = w2_ref.shape[1] // 9

    # Batched "weight @ pixels" contraction: (B,O,K) x (B,K,P) -> (B,O,P), f32 accumulation.
    dn = (((2,), (1,)), ((0,), (0,)))

    def wmat(w_ref, act):
        wb = jnp.broadcast_to(w_ref[...], (B,) + w_ref.shape)
        return jax.lax.dot_general(wb, act, dn, preferred_element_type=jnp.float32)

    x = x_ref[...]

    # --- fused [conv1 | shortcut] 1x1 conv + folded BN (one matmul feeds both paths) ---
    y = wmat(wcat_ref, x)
    y = y * scat_ref[...][None] + bcat_ref[...][None]
    y1 = jnp.maximum(y[:, :F1, :], 0.0).astype(jnp.bfloat16)   # main path, ReLU
    sc = y[:, F1:, :]                                          # shortcut, no ReLU

    # --- 3x3 conv (padding=1) as ONE im2col matmul with K = 9*F1 ---
    # tap(dy,dx)[p] = y1[p + (dy-1)*wo + (dx-1)], zeroed outside the image border.
    h_idx = pos_ref[0:1, :]
    w_idx = pos_ref[1:2, :]
    not_top = h_idx >= 1
    not_bot = h_idx <= ho - 2
    not_lft = w_idx >= 1
    not_rgt = w_idx <= wo - 2
    taps = []
    for dy in range(3):
        for dx in range(3):
            off = (dy - 1) * wo + (dx - 1)
            t = y1 if off == 0 else jnp.roll(y1, -off, axis=2)
            conds = []
            if dy == 0:
                conds.append(not_top)
            if dy == 2:
                conds.append(not_bot)
            if dx == 0:
                conds.append(not_lft)
            if dx == 2:
                conds.append(not_rgt)
            if conds:
                m = conds[0]
                for c in conds[1:]:
                    m = jnp.logical_and(m, c)
                t = jnp.where(m, t, 0.0)
            taps.append(t)
    patches = jnp.concatenate(taps, axis=1)                    # (B, 9*F1, P) bf16

    y2 = wmat(w2_ref, patches)
    y2 = jnp.maximum(y2 * s2_ref[...][None] + b2_ref[...][None], 0.0)

    # --- final 1x1 conv + BN, residual add, ReLU ---
    y3 = wmat(w3_ref, y2.astype(jnp.bfloat16))
    y3 = y3 * s3_ref[...][None] + b3_ref[...][None]
    o_ref[...] = jnp.maximum(y3 + sc, 0.0).astype(o_ref.dtype)


def _fold_bn(gamma, beta, mean, var):
    scale = gamma / jnp.sqrt(var + EPS)
    bias = beta - mean * scale
    return (scale.reshape(-1, 1).astype(jnp.float32),
            bias.reshape(-1, 1).astype(jnp.float32))


def conv_block(x_nchw, params, stride):
    """ConvBlock forward. x_nchw: (N, Cin, H, W) float32, NCHW like PyTorch."""
    N, Cin, H, W = x_nchw.shape
    # stride for the leading 1x1 convs == spatial subsampling (identity for stride=1);
    # the NCHW -> (N, Cin, H*W) reshape is free, so there are no transposes in the glue.
    xs = x_nchw[:, :, ::stride, ::stride]
    Ho, Wo = xs.shape[2], xs.shape[3]
    P = Ho * Wo
    x = xs.reshape(N, Cin, P).astype(jnp.bfloat16)

    F1 = params["w1"].shape[0]
    F2 = params["w2"].shape[0]
    F3 = params["w3"].shape[0]

    # PyTorch OIHW weights -> kernel layouts; conv1 and shortcut fused; all bf16.
    w1 = params["w1"][:, :, 0, 0]                              # (F1, Cin)
    ws = params["ws"][:, :, 0, 0]                              # (F3, Cin)
    wcat = jnp.concatenate([w1, ws], axis=0).astype(jnp.bfloat16)
    w2 = jnp.transpose(params["w2"], (0, 2, 3, 1)).reshape(F2, 9 * F1).astype(jnp.bfloat16)
    w3 = params["w3"][:, :, 0, 0].astype(jnp.bfloat16)         # (F3, F2)

    s1, b1 = _fold_bn(*params["bn1"])
    ss, bs = _fold_bn(*params["bns"])
    s2, b2 = _fold_bn(*params["bn2"])
    s3, b3 = _fold_bn(*params["bn3"])
    scat = jnp.concatenate([s1, ss], axis=0)
    bcat = jnp.concatenate([b1, bs], axis=0)

    # Per-pixel (row, col) indices for the 3x3 border masks (computed once, host/XLA side).
    pidx = jnp.arange(P, dtype=jnp.int32)
    pos_hw = jnp.stack([pidx // Wo, pidx % Wo])                # (2, P)

    # Batch tile: pack as many images per grid step as fit a small VMEM budget.
    per_img = P * (Cin * 2 + F3 * 4 + ((F1 + F3) + 9 * F1 + F2 + F3) * 4)
    bt = max(1, min(N, (4 << 20) // max(per_img, 1)))
    while N % bt:
        bt -= 1
    grid = (N // bt,)

    # Weight / scale / bias blocks have constant index maps; at real channel counts mark them
    # pipeline_mode=pl.Buffered(1) to save VMEM headroom.
    full = lambda a: pl.BlockSpec(a.shape, lambda b: (0,) * a.ndim)

    out = pl.pallas_call(
        functools.partial(_conv_block_kernel, ho=Ho, wo=Wo),
        out_shape=jax.ShapeDtypeStruct((N, F3, P), jnp.float32),
        grid_spec=pltpu.PrefetchScalarGridSpec(
            num_scalar_prefetch=0,
            grid=grid,
            in_specs=[
                pl.BlockSpec((bt, Cin, P), lambda b: (b, 0, 0)),
                full(pos_hw),
                full(wcat), full(scat), full(bcat),
                full(w2), full(s2), full(b2),
                full(w3), full(s3), full(b3),
            ],
            out_specs=pl.BlockSpec((bt, F3, P), lambda b: (b, 0, 0)),
        ),
        # Batch tiles are independent -> "parallel" lets multi-TensorCore chips split them.
        # (Raise vmem_limit_bytes here when scaling to real ResNet channel/spatial sizes.)
        compiler_params=pltpu.CompilerParams(
            dimension_semantics=("parallel",)),
    )(x, pos_hw, wcat, scat, bcat, w2, s2, b2, w3, s3, b3)

    return out.reshape(N, F3, Ho, Wo)   # already NCHW; reshape is free


# ----------------------------- pure-JAX reference -----------------------------
def _ref_conv(x, w, stride, pad):
    return jax.lax.conv_general_dilated(
        x, w, (stride, stride), [(pad, pad), (pad, pad)],
        dimension_numbers=("NCHW", "OIHW", "NCHW"),
        precision=jax.lax.Precision.HIGHEST)


def _ref_bn(x, gamma, beta, mean, var):
    g = gamma[None, :, None, None]
    b = beta[None, :, None, None]
    m = mean[None, :, None, None]
    v = var[None, :, None, None]
    return (x - m) / jnp.sqrt(v + EPS) * g + b


def conv_block_ref(x, params, stride):
    y = _ref_conv(x, params["w1"], stride, 0)
    y = jax.nn.relu(_ref_bn(y, *params["bn1"]))
    y = _ref_conv(y, params["w2"], 1, 1)
    y = jax.nn.relu(_ref_bn(y, *params["bn2"]))
    y = _ref_conv(y, params["w3"], 1, 0)
    y = _ref_bn(y, *params["bn3"])
    sc = _ref_conv(x, params["ws"], stride, 0)
    sc = _ref_bn(sc, *params["bns"])
    return jax.nn.relu(y + sc)


# ----------------------------------- main --------------------------------------
def _make_params(key, in_ch, k_size, filters):
    F1, F2, F3 = filters
    ks = jax.random.split(key, 20)

    def bn(k, c):
        k1, k2, k3, k4 = jax.random.split(k, 4)
        gamma = 1.0 + 0.1 * jax.random.normal(k1, (c,), jnp.float32)
        beta = 0.1 * jax.random.normal(k2, (c,), jnp.float32)
        mean = 0.1 * jax.random.normal(k3, (c,), jnp.float32)
        var = jnp.abs(jax.random.normal(k4, (c,), jnp.float32)) + 0.5
        return (gamma, beta, mean, var)

    return {
        "w1": 0.2 * jax.random.normal(ks[0], (F1, in_ch, 1, 1), jnp.float32),
        "bn1": bn(ks[1], F1),
        "w2": 0.2 * jax.random.normal(ks[2], (F2, F1, k_size, k_size), jnp.float32),
        "bn2": bn(ks[3], F2),
        "w3": 0.2 * jax.random.normal(ks[4], (F3, F2, 1, 1), jnp.float32),
        "bn3": bn(ks[5], F3),
        "ws": 0.2 * jax.random.normal(ks[6], (F3, in_ch, 1, 1), jnp.float32),
        "bns": bn(ks[7], F3),
    }


if __name__ == "__main__":
    # Module config (mtl=False). padding=True in PyTorch == padding=1, so k_size must be 3
    # for the residual shapes to line up (as in the original network).
    in_ch, k_size, filters, stride = 4, 3, (8, 8, 16), 1
    N, H, W = 2, 16, 16

    key = jax.random.PRNGKey(0)
    kx, kp = jax.random.split(key)
    x = jax.random.normal(kx, (N, in_ch, H, W), jnp.float32)
    params = _make_params(kp, in_ch, k_size, filters)

    fwd = jax.jit(conv_block, static_argnums=2)
    out = jax.block_until_ready(fwd(x, params, stride))
    ref = jax.block_until_ready(conv_block_ref(x, params, stride))

    # bf16 inputs/weights with f32 accumulation -> a slightly looser tolerance than pure f32.
    np.testing.assert_allclose(np.asarray(out), np.asarray(ref), rtol=2e-2, atol=2e-2)
    print("KERNEL_OK")
</pallas_src>

<mosaic_0001>
module attributes {stable_mosaic.version = 11 : i64} {
  func.func @_conv_block_kernel(%arg0: i32, %arg1: memref<2x4x256xbf16, #tpu.memory_space<vmem>>, %arg2: memref<2x256xi32, #tpu.memory_space<vmem>>, %arg3: memref<24x4xbf16, #tpu.memory_space<vmem>>, %arg4: memref<24x1xf32, #tpu.memory_space<vmem>>, %arg5: memref<24x1xf32, #tpu.memory_space<vmem>>, %arg6: memref<8x72xbf16, #tpu.memory_space<vmem>>, %arg7: memref<8x1xf32, #tpu.memory_space<vmem>>, %arg8: memref<8x1xf32, #tpu.memory_space<vmem>>, %arg9: memref<16x8xbf16, #tpu.memory_space<vmem>>, %arg10: memref<16x1xf32, #tpu.memory_space<vmem>>, %arg11: memref<16x1xf32, #tpu.memory_space<vmem>>, %arg12: memref<2x16x256xf32, #tpu.memory_space<vmem>>) attributes {dimension_semantics = [#tpu.dimension_semantics<parallel>], iteration_bounds = array<i64: 1>, scalar_prefetch = 0 : i64, scratch_operands = 0 : i64, tpu.core_type = #tpu.core_type<tc>, window_params = [{transform_indices = @transform_0, window_bounds = array<i64: 2, 4, 256>}, {pipeline_mode = #tpu.pipeline_mode<synchronous>, transform_indices = @transform_1, window_bounds = array<i64: 2, 256>}, {pipeline_mode = #tpu.pipeline_mode<synchronous>, transform_indices = @transform_2, window_bounds = array<i64: 24, 4>}, {pipeline_mode = #tpu.pipeline_mode<synchronous>, transform_indices = @transform_3, window_bounds = array<i64: 24, 1>}, {pipeline_mode = #tpu.pipeline_mode<synchronous>, transform_indices = @transform_4, window_bounds = array<i64: 24, 1>}, {pipeline_mode = #tpu.pipeline_mode<synchronous>, transform_indices = @transform_5, window_bounds = array<i64: 8, 72>}, {pipeline_mode = #tpu.pipeline_mode<synchronous>, transform_indices = @transform_6, window_bounds = array<i64: 8, 1>}, {pipeline_mode = #tpu.pipeline_mode<synchronous>, transform_indices = @transform_7, window_bounds = array<i64: 8, 1>}, {pipeline_mode = #tpu.pipeline_mode<synchronous>, transform_indices = @transform_8, window_bounds = array<i64: 16, 8>}, {pipeline_mode = #tpu.pipeline_mode<synchronous>, transform_indices = @transform_9, window_bounds = array<i64: 16, 1>}, {pipeline_mode = #tpu.pipeline_mode<synchronous>, transform_indices = @transform_10, window_bounds = array<i64: 16, 1>}, {transform_indices = @transform_11, window_bounds = array<i64: 2, 16, 256>}]} {
    %c0 = arith.constant 0 : index
    %c0_0 = arith.constant 0 : index
    %c0_1 = arith.constant 0 : index
    %0 = vector.load %arg1[%c0, %c0_0, %c0_1] : memref<2x4x256xbf16, #tpu.memory_space<vmem>>, vector<2x4x256xbf16>
    %c0_2 = arith.constant 0 : index
    %c0_3 = arith.constant 0 : index
    %1 = vector.load %arg3[%c0_2, %c0_3] : memref<24x4xbf16, #tpu.memory_space<vmem>>, vector<24x4xbf16>
    %2 = vector.shape_cast %1 : vector<24x4xbf16> to vector<1x24x4xbf16>
    %3 = vector.broadcast %2 : vector<1x24x4xbf16> to vector<2x24x4xbf16>
    %cst = arith.constant dense<0.000000e+00> : vector<2x24x256xf32>
    %4 = tpu.matmul %3, %0, %cst {dimension_numbers = #tpu.dot_dimension_numbers<[2], [1], [1], [2], [0, 0, 0, 1, 1, 2], [0], [0]>} : vector<2x24x4xbf16>, vector<2x4x256xbf16>, vector<2x24x256xf32> -> vector<2x24x256xf32>
    %c0_4 = arith.constant 0 : index
    %c0_5 = arith.constant 0 : index
    %5 = vector.load %arg4[%c0_4, %c0_5] : memref<24x1xf32, #tpu.memory_space<vmem>>, vector<24x1xf32>
    %6 = vector.shape_cast %5 : vector<24x1xf32> to vector<1x24x1xf32>
    %7 = vector.broadcast %6 : vector<1x24x1xf32> to vector<2x24x256xf32>
    %8 = arith.mulf %4, %7 : vector<2x24x256xf32>
    %c0_6 = arith.constant 0 : index
    %c0_7 = arith.constant 0 : index
    %9 = vector.load %arg5[%c0_6, %c0_7] : memref<24x1xf32, #tpu.memory_space<vmem>>, vector<24x1xf32>
    %10 = vector.shape_cast %9 : vector<24x1xf32> to vector<1x24x1xf32>
    %11 = vector.broadcast %10 : vector<1x24x1xf32> to vector<2x24x256xf32>
    %12 = arith.addf %8, %11 : vector<2x24x256xf32>
    %13 = vector.extract_strided_slice %12 {offsets = [0, 0, 0], sizes = [2, 8, 256], strides = [1, 1, 1]} : vector<2x24x256xf32> to vector<2x8x256xf32>
    %cst_8 = arith.constant 0.000000e+00 : f32
    %14 = vector.broadcast %cst_8 : f32 to vector<2x8x256xf32>
    %15 = arith.maximumf %13, %14 : vector<2x8x256xf32>
    %16 = arith.truncf %15 : vector<2x8x256xf32> to vector<2x8x256xbf16>
    %17 = vector.extract_strided_slice %12 {offsets = [0, 8, 0], sizes = [2, 16, 256], strides = [1, 1, 1]} : vector<2x24x256xf32> to vector<2x16x256xf32>
    %c0_9 = arith.constant 0 : index
    %c0_10 = arith.constant 0 : index
    %18 = vector.load %arg2[%c0_9, %c0_10] : memref<2x256xi32, #tpu.memory_space<vmem>>, vector<1x256xi32>
    %c1 = arith.constant 1 : index
    %c0_11 = arith.constant 0 : index
    %19 = vector.load %arg2[%c1, %c0_11] : memref<2x256xi32, #tpu.memory_space<vmem>>, vector<1x256xi32>
    %c1_i32 = arith.constant 1 : i32
    %20 = vector.broadcast %c1_i32 : i32 to vector<1x256xi32>
    %21 = arith.cmpi sge, %18, %20 : vector<1x256xi32>
    %c14_i32 = arith.constant 14 : i32
    %22 = vector.broadcast %c14_i32 : i32 to vector<1x256xi32>
    %23 = arith.cmpi sle, %18, %22 : vector<1x256xi32>
    %c1_i32_12 = arith.constant 1 : i32
    %24 = vector.broadcast %c1_i32_12 : i32 to vector<1x256xi32>
    %25 = arith.cmpi sge, %19, %24 : vector<1x256xi32>
    %c14_i32_13 = arith.constant 14 : i32
    %26 = vector.broadcast %c14_i32_13 : i32 to vector<1x256xi32>
    %27 = arith.cmpi sle, %19, %26 : vector<1x256xi32>
    %28 = vector.extract_strided_slice %16 {offsets = [0, 0, 239], sizes = [2, 8, 17], strides = [1, 1, 1]} : vector<2x8x256xbf16> to vector<2x8x17xbf16>
    %29 = vector.extract_strided_slice %16 {offsets = [0, 0, 0], sizes = [2, 8, 239], strides = [1, 1, 1]} : vector<2x8x256xbf16> to vector<2x8x239xbf16>
    %30 = tpu.concatenate %28, %29 in 2 : vector<2x8x17xbf16>, vector<2x8x239xbf16> -> vector<2x8x256xbf16>
    %31 = arith.andi %21, %25 : vector<1x256xi1>
    %cst_14 = arith.constant 0.000000e+00 : f32
    %32 = arith.truncf %cst_14 : f32 to bf16
    %33 = vector.shape_cast %31 : vector<1x256xi1> to vector<1x1x256xi1>
    %34 = vector.broadcast %33 : vector<1x1x256xi1> to vector<2x8x256xi1>
    %35 = vector.broadcast %32 : bf16 to vector<2x8x256xbf16>
    %36 = arith.select %34, %30, %35 : vector<2x8x256xi1>, vector<2x8x256xbf16>
    %37 = vector.extract_strided_slice %16 {offsets = [0, 0, 240], sizes = [2, 8, 16], strides = [1, 1, 1]} : vector<2x8x256xbf16> to vector<2x8x16xbf16>
    %38 = vector.extract_strided_slice %16 {offsets = [0, 0, 0], sizes = [2, 8, 240], strides = [1, 1, 1]} : vector<2x8x256xbf16> to vector<2x8x240xbf16>
    %39 = tpu.concatenate %37, %38 in 2 : vector<2x8x16xbf16>, vector<2x8x240xbf16> -> vector<2x8x256xbf16>
    %cst_15 = arith.constant 0.000000e+00 : f32
    %40 = arith.truncf %cst_15 : f32 to bf16
    %41 = vector.shape_cast %21 : vector<1x256xi1> to vector<1x1x256xi1>
    %42 = vector.broadcast %41 : vector<1x1x256xi1> to vector<2x8x256xi1>
    %43 = vector.broadcast %40 : bf16 to vector<2x8x256xbf16>
    %44 = arith.select %42, %39, %43 : vector<2x8x256xi1>, vector<2x8x256xbf16>
    %45 = vector.extract_strided_slice %16 {offsets = [0, 0, 241], sizes = [2, 8, 15], strides = [1, 1, 1]} : vector<2x8x256xbf16> to vector<2x8x15xbf16>
    %46 = vector.extract_strided_slice %16 {offsets = [0, 0, 0], sizes = [2, 8, 241], strides = [1, 1, 1]} : vector<2x8x256xbf16> to vector<2x8x241xbf16>
    %47 = tpu.concatenate %45, %46 in 2 : vector<2x8x15xbf16>, vector<2x8x241xbf16> -> vector<2x8x256xbf16>
    %48 = arith.andi %21, %27 : vector<1x256xi1>
    %cst_16 = arith.constant 0.000000e+00 : f32
    %49 = arith.truncf %cst_16 : f32 to bf16
    %50 = vector.shape_cast %48 : vector<1x256xi1> to vector<1x1x256xi1>
    %51 = vector.broadcast %50 : vector<1x1x256xi1> to vector<2x8x256xi1>
    %52 = vector.broadcast %49 : bf16 to vector<2x8x256xbf16>
    %53 = arith.select %51, %47, %52 : vector<2x8x256xi1>, vector<2x8x256xbf16>
    %54 = vector.extract_strided_slice %16 {offsets = [0, 0, 255], sizes = [2, 8, 1], strides = [1, 1, 1]} : vector<2x8x256xbf16> to vector<2x8x1xbf16>
    %55 = vector.extract_strided_slice %16 {offsets = [0, 0, 0], sizes = [2, 8, 255], strides = [1, 1, 1]} : vector<2x8x256xbf16> to vector<2x8x255xbf16>
    %56 = tpu.concatenate %54, %55 in 2 : vector<2x8x1xbf16>, vector<2x8x255xbf16> -> vector<2x8x256xbf16>
    %cst_17 = arith.constant 0.000000e+00 : f32
    %57 = arith.truncf %cst_17 : f32 to bf16
    %58 = vector.shape_cast %25 : vector<1x256xi1> to vector<1x1x256xi1>
    %59 = vector.broadcast %58 : vector<1x1x256xi1> to vector<2x8x256xi1>
    %60 = vector.broadcast %57 : bf16 to vector<2x8x256xbf16>
    %61 = arith.select %59, %56, %60 : vector<2x8x256xi1>, vector<2x8x256xbf16>
    %62 = vector.extract_strided_slice %16 {offsets = [0, 0, 1], sizes = [2, 8, 255], strides = [1, 1, 1]} : vector<2x8x256xbf16> to vector<2x8x255xbf16>
    %63 = vector.extract_strided_slice %16 {offsets = [0, 0, 0], sizes = [2, 8, 1], strides = [1, 1, 1]} : vector<2x8x256xbf16> to vector<2x8x1xbf16>
    %64 = tpu.concatenate %62, %63 in 2 : vector<2x8x255xbf16>, vector<2x8x1xbf16> -> vector<2x8x256xbf16>
    %cst_18 = arith.constant 0.000000e+00 : f32
    %65 = arith.truncf %cst_18 : f32 to bf16
    %66 = vector.shape_cast %27 : vector<1x256xi1> to vector<1x1x256xi1>
    %67 = vector.broadcast %66 : vector<1x1x256xi1> to vector<2x8x256xi1>
    %68 = vector.broadcast %65 : bf16 to vector<2x8x256xbf16>
    %69 = arith.select %67, %64, %68 : vector<2x8x256xi1>, vector<2x8x256xbf16>
    %70 = vector.extract_strided_slice %16 {offsets = [0, 0, 15], sizes = [2, 8, 241], strides = [1, 1, 1]} : vector<2x8x256xbf16> to vector<2x8x241xbf16>
    %71 = vector.extract_strided_slice %16 {offsets = [0, 0, 0], sizes = [2, 8, 15], strides = [1, 1, 1]} : vector<2x8x256xbf16> to vector<2x8x15xbf16>
    %72 = tpu.concatenate %70, %71 in 2 : vector<2x8x241xbf16>, vector<2x8x15xbf16> -> vector<2x8x256xbf16>
    %73 = arith.andi %23, %25 : vector<1x256xi1>
    %cst_19 = arith.constant 0.000000e+00 : f32
    %74 = arith.truncf %cst_19 : f32 to bf16
    %75 = vector.shape_cast %73 : vector<1x256xi1> to vector<1x1x256xi1>
    %76 = vector.broadcast %75 : vector<1x1x256xi1> to vector<2x8x256xi1>
    %77 = vector.broadcast %74 : bf16 to vector<2x8x256xbf16>
    %78 = arith.select %76, %72, %77 : vector<2x8x256xi1>, vector<2x8x256xbf16>
    %79 = vector.extract_strided_slice %16 {offsets = [0, 0, 16], sizes = [2, 8, 240], strides = [1, 1, 1]} : vector<2x8x256xbf16> to vector<2x8x240xbf16>
    %80 = vector.extract_strided_slice %16 {offsets = [0, 0, 0], sizes = [2, 8, 16], strides = [1, 1, 1]} : vector<2x8x256xbf16> to vector<2x8x16xbf16>
    %81 = tpu.concatenate %79, %80 in 2 : vector<2x8x240xbf16>, vector<2x8x16xbf16> -> vector<2x8x256xbf16>
    %cst_20 = arith.constant 0.000000e+00 : f32
    %82 = arith.truncf %cst_20 : f32 to bf16
    %83 = vector.shape_cast %23 : vector<1x256xi1> to vector<1x1x256xi1>
    %84 = vector.broadcast %83 : vector<1x1x256xi1> to vector<2x8x256xi1>
    %85 = vector.broadcast %82 : bf16 to vector<2x8x256xbf16>
    %86 = arith.select %84, %81, %85 : vector<2x8x256xi1>, vector<2x8x256xbf16>
    %87 = vector.extract_strided_slice %16 {offsets = [0, 0, 17], sizes = [2, 8, 239], strides = [1, 1, 1]} : vector<2x8x256xbf16> to vector<2x8x239xbf16>
    %88 = vector.extract_strided_slice %16 {offsets = [0, 0, 0], sizes = [2, 8, 17], strides = [1, 1, 1]} : vector<2x8x256xbf16> to vector<2x8x17xbf16>
    %89 = tpu.concatenate %87, %88 in 2 : vector<2x8x239xbf16>, vector<2x8x17xbf16> -> vector<2x8x256xbf16>
    %90 = arith.andi %23, %27 : vector<1x256xi1>
    %cst_21 = arith.constant 0.000000e+00 : f32
    %91 = arith.truncf %cst_21 : f32 to bf16
    %92 = vector.shape_cast %90 : vector<1x256xi1> to vector<1x1x256xi1>
    %93 = vector.broadcast %92 : vector<1x1x256xi1> to vector<2x8x256xi1>
    %94 = vector.broadcast %91 : bf16 to vector<2x8x256xbf16>
    %95 = arith.select %93, %89, %94 : vector<2x8x256xi1>, vector<2x8x256xbf16>
    %96 = tpu.concatenate %36, %44, %53, %61, %16, %69, %78, %86, %95 in 1 : vector<2x8x256xbf16>, vector<2x8x256xbf16>, vector<2x8x256xbf16>, vector<2x8x256xbf16>, vector<2x8x256xbf16>, vector<2x8x256xbf16>, vector<2x8x256xbf16>, vector<2x8x256xbf16>, vector<2x8x256xbf16> -> vector<2x72x256xbf16>
    %c0_22 = arith.constant 0 : index
    %c0_23 = arith.constant 0 : index
    %97 = vector.load %arg6[%c0_22, %c0_23] : memref<8x72xbf16, #tpu.memory_space<vmem>>, vector<8x72xbf16>
    %98 = vector.shape_cast %97 : vector<8x72xbf16> to vector<1x8x72xbf16>
    %99 = vector.broadcast %98 : vector<1x8x72xbf16> to vector<2x8x72xbf16>
    %cst_24 = arith.constant dense<0.000000e+00> : vector<2x8x256xf32>
    %100 = tpu.matmul %99, %96, %cst_24 {dimension_numbers = #tpu.dot_dimension_numbers<[2], [1], [1], [2], [0, 0, 0, 1, 1, 2], [0], [0]>} : vector<2x8x72xbf16>, vector<2x72x256xbf16>, vector<2x8x256xf32> -> vector<2x8x256xf32>
    %c0_25 = arith.constant 0 : index
    %c0_26 = arith.constant 0 : index
    %101 = vector.load %arg7[%c0_25, %c0_26] : memref<8x1xf32, #tpu.memory_space<vmem>>, vector<8x1xf32>
    %102 = vector.shape_cast %101 : vector<8x1xf32> to vector<1x8x1xf32>
    %103 = vector.broadcast %102 : vector<1x8x1xf32> to vector<2x8x256xf32>
    %104 = arith.mulf %100, %103 : vector<2x8x256xf32>
    %c0_27 = arith.constant 0 : index
    %c0_28 = arith.constant 0 : index
    %105 = vector.load %arg8[%c0_27, %c0_28] : memref<8x1xf32, #tpu.memory_space<vmem>>, vector<8x1xf32>
    %106 = vector.shape_cast %105 : vector<8x1xf32> to vector<1x8x1xf32>
    %107 = vector.broadcast %106 : vector<1x8x1xf32> to vector<2x8x256xf32>
    %108 = arith.addf %104, %107 : vector<2x8x256xf32>
    %cst_29 = arith.constant 0.000000e+00 : f32
    %109 = vector.broadcast %cst_29 : f32 to vector<2x8x256xf32>
    %110 = arith.maximumf %108, %109 : vector<2x8x256xf32>
    %111 = arith.truncf %110 : vector<2x8x256xf32> to vector<2x8x256xbf16>
    %c0_30 = arith.constant 0 : index
    %c0_31 = arith.constant 0 : index
    %112 = vector.load %arg9[%c0_30, %c0_31] : memref<16x8xbf16, #tpu.memory_space<vmem>>, vector<16x8xbf16>
    %113 = vector.shape_cast %112 : vector<16x8xbf16> to vector<1x16x8xbf16>
    %114 = vector.broadcast %113 : vector<1x16x8xbf16> to vector<2x16x8xbf16>
    %cst_32 = arith.constant dense<0.000000e+00> : vector<2x16x256xf32>
    %115 = tpu.matmul %114, %111, %cst_32 {dimension_numbers = #tpu.dot_dimension_numbers<[2], [1], [1], [2], [0, 0, 0, 1, 1, 2], [0], [0]>} : vector<2x16x8xbf16>, vector<2x8x256xbf16>, vector<2x16x256xf32> -> vector<2x16x256xf32>
    %c0_33 = arith.constant 0 : index
    %c0_34 = arith.constant 0 : index
    %116 = vector.load %arg10[%c0_33, %c0_34] : memref<16x1xf32, #tpu.memory_space<vmem>>, vector<16x1xf32>
    %117 = vector.shape_cast %116 : vector<16x1xf32> to vector<1x16x1xf32>
    %118 = vector.broadcast %117 : vector<1x16x1xf32> to vector<2x16x256xf32>
    %119 = arith.mulf %115, %118 : vector<2x16x256xf32>
    %c0_35 = arith.constant 0 : index
    %c0_36 = arith.constant 0 : index
    %120 = vector.load %arg11[%c0_35, %c0_36] : memref<16x1xf32, #tpu.memory_space<vmem>>, vector<16x1xf32>
    %121 = vector.shape_cast %120 : vector<16x1xf32> to vector<1x16x1xf32>
    %122 = vector.broadcast %121 : vector<1x16x1xf32> to vector<2x16x256xf32>
    %123 = arith.addf %119, %122 : vector<2x16x256xf32>
    %124 = arith.addf %123, %17 : vector<2x16x256xf32>
    %cst_37 = arith.constant 0.000000e+00 : f32
    %125 = vector.broadcast %cst_37 : f32 to vector<2x16x256xf32>
    %126 = arith.maximumf %124, %125 : vector<2x16x256xf32>
    %c0_38 = arith.constant 0 : index
    %c0_39 = arith.constant 0 : index
    %c0_40 = arith.constant 0 : index
    %127 = vector.load %arg12[%c0_38, %c0_39, %c0_40] : memref<2x16x256xf32, #tpu.memory_space<vmem>>, vector<2x16x256xf32>
    tpu.vector_store %arg12[%c0_38, %c0_39, %c0_40], %126 {strides = array<i32>} : memref<2x16x256xf32, #tpu.memory_space<vmem>>, vector<2x16x256xf32>,
    return
  }
  func.func @transform_0(%arg0: i32) -> (i32, i32, i32) {
    %c0_i32 = arith.constant 0 : i32
    %c0_i32_0 = arith.constant 0 : i32
    %c0_i32_1 = arith.constant 0 : i32
    return %arg0, %c0_i32, %c0_i32_0 : i32, i32, i32
  }
  func.func @transform_1(%arg0: i32) -> (i32, i32) {
    %c0_i32 = arith.constant 0 : i32
    %c0_i32_0 = arith.constant 0 : i32
    %c0_i32_1 = arith.constant 0 : i32
    return %c0_i32, %c0_i32_0 : i32, i32
  }
  func.func @transform_2(%arg0: i32) -> (i32, i32) {
    %c0_i32 = arith.constant 0 : i32
    %c0_i32_0 = arith.constant 0 : i32
    %c0_i32_1 = arith.constant 0 : i32
    return %c0_i32, %c0_i32_0 : i32, i32
  }
  func.func @transform_3(%arg0: i32) -> (i32, i32) {
    %c0_i32 = arith.constant 0 : i32
    %c0_i32_0 = arith.constant 0 : i32
    %c0_i32_1 = arith.constant 0 : i32
    return %c0_i32, %c0_i32_0 : i32, i32
  }
  func.func @transform_4(%arg0: i32) -> (i32, i32) {
    %c0_i32 = arith.constant 0 : i32
    %c0_i32_0 = arith.constant 0 : i32
    %c0_i32_1 = arith.constant 0 : i32
    return %c0_i32, %c0_i32_0 : i32, i32
  }
  func.func @transform_5(%arg0: i32) -> (i32, i32) {
    %c0_i32 = arith.constant 0 : i32
    %c0_i32_0 = arith.constant 0 : i32
    %c0_i32_1 = arith.constant 0 : i32
    return %c0_i32, %c0_i32_0 : i32, i32
  }
  func.func @transform_6(%arg0: i32) -> (i32, i32) {
    %c0_i32 = arith.constant 0 : i32
    %c0_i32_0 = arith.constant 0 : i32
    %c0_i32_1 = arith.constant 0 : i32
    return %c0_i32, %c0_i32_0 : i32, i32
  }
  func.func @transform_7(%arg0: i32) -> (i32, i32) {
    %c0_i32 = arith.constant 0 : i32
    %c0_i32_0 = arith.constant 0 : i32
    %c0_i32_1 = arith.constant 0 : i32
    return %c0_i32, %c0_i32_0 : i32, i32
  }
  func.func @transform_8(%arg0: i32) -> (i32, i32) {
    %c0_i32 = arith.constant 0 : i32
    %c0_i32_0 = arith.constant 0 : i32
    %c0_i32_1 = arith.constant 0 : i32
    return %c0_i32, %c0_i32_0 : i32, i32
  }
  func.func @transform_9(%arg0: i32) -> (i32, i32) {
    %c0_i32 = arith.constant 0 : i32
    %c0_i32_0 = arith.constant 0 : i32
    %c0_i32_1 = arith.constant 0 : i32
    return %c0_i32, %c0_i32_0 : i32, i32
  }
  func.func @transform_10(%arg0: i32) -> (i32, i32) {
    %c0_i32 = arith.constant 0 : i32
    %c0_i32_0 = arith.constant 0 : i32
    %c0_i32_1 = arith.constant 0 : i32
    return %c0_i32, %c0_i32_0 : i32, i32
  }
  func.func @transform_11(%arg0: i32) -> (i32, i32, i32) {
    %c0_i32 = arith.constant 0 : i32
    %c0_i32_0 = arith.constant 0 : i32
    %c0_i32_1 = arith.constant 0 : i32
    return %arg0, %c0_i32, %c0_i32_0 : i32, i32, i32
  }
}

</mosaic_0001>

<llo_original>
// kernel: conv_block.1
$region0: #{conv_block.1}
  #allocation0 [shape = 'u32[]', space=smem, size = 0x4, offset = 0x4, fixed_abs, tag = 'smem constant byte address 0x4 - core index']
  #allocation1 [shape = 'u32[144,128]{1,0:T(1,128)}', space=vmem, size = 0x12000, scoped, tag = 'internal scratch']
  %s0 = inlined_call_operand.vmem [shape: bf16[2,4,256], index: 0, kind: input, shape index: {}]
  %s1 = inlined_call_operand.vmem [shape: s32[2,256], index: 1, kind: input, shape index: {}]
  %s2 = inlined_call_operand.vmem [shape: bf16[24,4], index: 2, kind: input, shape index: {}]
  %s3 = inlined_call_operand.vmem [shape: f32[24,1], index: 3, kind: input, shape index: {}]
  %s4 = inlined_call_operand.vmem [shape: f32[24,1], index: 4, kind: input, shape index: {}]
  %s5 = inlined_call_operand.vmem [shape: bf16[8,72], index: 5, kind: input, shape index: {}]
  %s6 = inlined_call_operand.vmem [shape: f32[8,1], index: 6, kind: input, shape index: {}]
  %s7 = inlined_call_operand.vmem [shape: f32[8,1], index: 7, kind: input, shape index: {}]
  %s8 = inlined_call_operand.vmem [shape: bf16[16,8], index: 8, kind: input, shape index: {}]
  %s9 = inlined_call_operand.vmem [shape: f32[16,1], index: 9, kind: input, shape index: {}]
  %s10 = inlined_call_operand.vmem [shape: f32[16,1], index: 10, kind: input, shape index: {}]
  %s11 = inlined_call_operand.vmem [shape: f32[2,16,256], index: 11, kind: output, shape index: {}]
  %s12 = sld [smem:[#allocation0]]
  $region54: #{conv_block.1} parent=0
    _
  %s14 = ssub.s32 1, %s12
  %s15 = scalar_select 0, %s14, %s12
  // Predicated region
  $region2: #{conv_block.1} parent=0 // pred_check
    _
  $region3: #{conv_block.1} parent=0 // pred_check_branch
    %17 = sbr.rel (0) target = $region5
  $region4: #{conv_block.1} parent=0 // pred_region
    _
  $region5: #{conv_block.1} parent=0 // pred_fallthru
    _
  // Predicated region
  $region6: #{conv_block.1} parent=0 // pred_check
    _
  $region7: #{conv_block.1} parent=0 // pred_check_branch
    %19 = sbr.rel (0) target = $region9
  $region8: #{conv_block.1} parent=0 // pred_region
    _
  $region9: #{conv_block.1} parent=0 // pred_fallthru
    _
  // Predicated region
  $region10: #{conv_block.1} parent=0 // pred_check
    _
  $region11: #{conv_block.1} parent=0 // pred_check_branch
    %21 = sbr.rel (0) target = $region13
  $region12: #{conv_block.1} parent=0 // pred_region
    _
  $region13: #{conv_block.1} parent=0 // pred_fallthru
    _
  // Predicated region
  $region14: #{conv_block.1} parent=0 // pred_check
    _
  $region15: #{conv_block.1} parent=0 // pred_check_branch
    %23 = sbr.rel (0) target = $region17
  $region16: #{conv_block.1} parent=0 // pred_region
    _
  $region17: #{conv_block.1} parent=0 // pred_fallthru
    _
  // Predicated region
  $region18: #{conv_block.1} parent=0 // pred_check
    _
  $region19: #{conv_block.1} parent=0 // pred_check_branch
    %25 = sbr.rel (0) target = $region21
  $region20: #{conv_block.1} parent=0 // pred_region
    _
  $region21: #{conv_block.1} parent=0 // pred_fallthru
    _
  // Predicated region
  $region22: #{conv_block.1} parent=0 // pred_check
    _
  $region23: #{conv_block.1} parent=0 // pred_check_branch
    %27 = sbr.rel (0) target = $region25
  $region24: #{conv_block.1} parent=0 // pred_region
    _
  $region25: #{conv_block.1} parent=0 // pred_fallthru
    _
  // Predicated region
  $region26: #{conv_block.1} parent=0 // pred_check
    _
  $region27: #{conv_block.1} parent=0 // pred_check_branch
    %29 = sbr.rel (0) target = $region29
  $region28: #{conv_block.1} parent=0 // pred_region
    _
  $region29: #{conv_block.1} parent=0 // pred_fallthru
    _
  // Predicated region
  $region30: #{conv_block.1} parent=0 // pred_check
    _
  $region31: #{conv_block.1} parent=0 // pred_check_branch
    %31 = sbr.rel (0) target = $region33
  $region32: #{conv_block.1} parent=0 // pred_region
    _
  $region33: #{conv_block.1} parent=0 // pred_fallthru
    _
  // Predicated region
  $region34: #{conv_block.1} parent=0 // pred_check
    _
  $region35: #{conv_block.1} parent=0 // pred_check_branch
    %33 = sbr.rel (0) target = $region37
  $region36: #{conv_block.1} parent=0 // pred_region
    _
  $region37: #{conv_block.1} parent=0 // pred_fallthru
    _
  // Predicated region
  $region38: #{conv_block.1} parent=0 // pred_check
    _
  $region39: #{conv_block.1} parent=0 // pred_check_branch
    %35 = sbr.rel (0) target = $region41
  $region40: #{conv_block.1} parent=0 // pred_region
    _
  $region41: #{conv_block.1} parent=0 // pred_fallthru
    _
  // Predicated region
  $region42: #{conv_block.1} parent=0 // pred_check
    _
  $region43: #{conv_block.1} parent=0 // pred_check_branch
    %37 = sbr.rel (0) target = $region45
  $region44: #{conv_block.1} parent=0 // pred_region
    _
  $region45: #{conv_block.1} parent=0 // pred_fallthru
    _
  %v41 = vld [vmem:[%s0] sm:$0xf]
  %v42 = vld [vmem:[%s0 + $0x4] sm:$0xf]
  %v43 = vld [vmem:[%s2] sm:$0xf]
  %v44 = vld [vmem:[%s2 + $0x4] sm:$0xf]
  %v45 = vld [vmem:[%s2 + $0x8] sm:$0xf]
  %v49 = vunpack.c.l.b16 %v43
  %v50 = vunpack.c.l.b16 %v44
  %v51 = vunpack.c.l.b16 %v45
  %v52 = vpack.c.b16 %v50, %v49
  %v53 = vpack.c.b16 %v51, %v51
  %v56 = vunpack.c.l.s4 1983009808
  %v57 = vunpack.c.0.s8 %v56
  %v58 = vlaneseq
  %v59 = vshrl.u32 %v58, 7
  %v60 = vsub.s32 %v57, %v59
  %v61 = vrot.slane %v41, %v60
  %v62 = vcombine.high %v61, %v61
  %vm63 = vcmask 31744
  %v65 = vsel %vm63, %v52, 0
  %v68 = vsel %vm63, %v53, 0
  %vm70 = vcmask 1041408
  %v72 = vsel %vm70, %v61, 0
  %v75 = vsel %vm70, %v62, 0
  %77 = vmatprep.subr.bf16.mxu0 %v75
  %78 = vmatpush1.bf16.msra.mxu0 %v72
  %79 = vmatprep.subr.bf16.mxu0 0
  %80 = vmatpush1.bf16.msra.mxu0 0
  %81 = vmatprep.subr.bf16.mxu0 0
  %82 = vmatpush1.bf16.msra.mxu0 0
  %83 = vmatprep.subr.bf16.mxu0 0
  %84 = vmatpush1.bf16.msra.mxu0 0
  %85 = vmatprep.subr.bf16.mxu0 0
  %86 = vmatpush1.bf16.msra.mxu0 0
  %87 = vmatprep.subr.bf16.mxu0 0
  %88 = vmatpush1.bf16.msra.mxu0 0
  %89 = vmatprep.subr.bf16.mxu0 0
  %90 = vmatpush1.bf16.msra.mxu0 0
  %91 = vmatprep.subr.bf16.mxu0 0
  %92 = vmatpush1.bf16.msra.mxu0 0
  %93 = vmatprep.subr.bf16.mxu0 0
  %94 = vmatpush1.bf16.msra.mxu0 0
  %95 = vmatprep.subr.bf16.mxu0 0
  %96 = vmatpush1.bf16.msra.mxu0 0
  %97 = vmatprep.subr.bf16.mxu0 0
  %98 = vmatpush1.bf16.msra.mxu0 0
  %99 = vmatprep.subr.bf16.mxu0 0
  %100 = vmatpush1.bf16.msra.mxu0 0
  %101 = vmatprep.subr.bf16.mxu0 0
  %102 = vmatpush1.bf16.msra.mxu0 0
  %103 = vmatprep.subr.bf16.mxu0 0
  %104 = vmatpush1.bf16.msra.mxu0 0
  %105 = vmatprep.subr.bf16.mxu0 0
  %106 = vmatpush1.bf16.msra.mxu0 0
  %107 = vmatprep.subr.bf16.mxu0 0
  %108 = vmatpush1.bf16.msra.mxu0 0
  %109 = vmatprep.mubr.bf16.mxu0 0
  %110 = vmatmul.mubr.bf16.gmra.mrb[0].mxu0 %v65
  %v111 = vpop.f32.mrb[0].mxu0
  %v112 = vadd.f32 0.0, %v111
  %v113 = vpop.f32.mrb[0].mxu0
  %v114 = vadd.f32 0.0, %v113
  %v115 = vpop.f32.mrb[0].mxu0
  %v116 = vadd.f32 0.0, %v115
  %v117 = vpop.f32.mrb[0].mxu0
  %v118 = vadd.f32 0.0, %v117
  %119 = vmatprep.mubr.bf16.mxu0 0
  %120 = vmatmul.mubr.bf16.gmra.mrb[0].mxu0 %v68
  %v121 = vpop.f32.mrb[0].mxu0
  %v122 = vadd.f32 0.0, %v121
  %v123 = vpop.f32.mrb[0].mxu0
  %v124 = vadd.f32 0.0, %v123
  %v125 = vpop.f32.mrb[0].mxu0
  %v126 = vpop.f32.mrb[0].mxu0
  %127 = vdwg.mxu0
  %v130 = vunpack.c.l.s4 1983009808
  %v131 = vunpack.c.0.s8 %v130
  %v132 = vlaneseq
  %v133 = vshrl.u32 %v132, 7
  %v134 = vsub.s32 %v131, %v133
  %v135 = vrot.slane %v42, %v134
  %v136 = vcombine.high %v135, %v135
  %v138 = vsel %vm70, %v135, 0
  %v141 = vsel %vm70, %v136, 0
  %143 = vmatprep.subr.bf16.mxu0 %v141
  %144 = vmatpush1.bf16.msra.mxu0 %v138
  %145 = vmatprep.subr.bf16.mxu0 0
  %146 = vmatpush1.bf16.msra.mxu0 0
  %147 = vmatprep.subr.bf16.mxu0 0
  %148 = vmatpush1.bf16.msra.mxu0 0
  %149 = vmatprep.subr.bf16.mxu0 0
  %150 = vmatpush1.bf16.msra.mxu0 0
  %151 = vmatprep.subr.bf16.mxu0 0
  %152 = vmatpush1.bf16.msra.mxu0 0
  %153 = vmatprep.subr.bf16.mxu0 0
  %154 = vmatpush1.bf16.msra.mxu0 0
  %155 = vmatprep.subr.bf16.mxu0 0
  %156 = vmatpush1.bf16.msra.mxu0 0
  %157 = vmatprep.subr.bf16.mxu0 0
  %158 = vmatpush1.bf16.msra.mxu0 0
  %159 = vmatprep.subr.bf16.mxu0 0
  %160 = vmatpush1.bf16.msra.mxu0 0
  %161 = vmatprep.subr.bf16.mxu0 0
  %162 = vmatpush1.bf16.msra.mxu0 0
  %163 = vmatprep.subr.bf16.mxu0 0
  %164 = vmatpush1.bf16.msra.mxu0 0
  %165 = vmatprep.subr.bf16.mxu0 0
  %166 = vmatpush1.bf16.msra.mxu0 0
  %167 = vmatprep.subr.bf16.mxu0 0
  %168 = vmatpush1.bf16.msra.mxu0 0
  %169 = vmatprep.subr.bf16.mxu0 0
  %170 = vmatpush1.bf16.msra.mxu0 0
  %171 = vmatprep.subr.bf16.mxu0 0
  %172 = vmatpush1.bf16.msra.mxu0 0
  %173 = vmatprep.subr.bf16.mxu0 0
  %174 = vmatpush1.bf16.msra.mxu0 0
  %175 = vmatprep.mubr.bf16.mxu0 0
  %176 = vmatmul.mubr.bf16.gmra.mrb[0].mxu0 %v65
  %v177 = vpop.f32.mrb[0].mxu0
  %v178 = vadd.f32 0.0, %v177
  %v179 = vpop.f32.mrb[0].mxu0
  %v180 = vadd.f32 0.0, %v179
  %v181 = vpop.f32.mrb[0].mxu0
  %v182 = vadd.f32 0.0, %v181
  %v183 = vpop.f32.mrb[0].mxu0
  %v184 = vadd.f32 0.0, %v183
  %185 = vmatprep.mubr.bf16.mxu0 0
  %186 = vmatmul.mubr.bf16.gmra.mrb[0].mxu0 %v68
  %v187 = vpop.f32.mrb[0].mxu0
  %v188 = vadd.f32 0.0, %v187
  %v189 = vpop.f32.mrb[0].mxu0
  %v190 = vadd.f32 0.0, %v189
  %v191 = vpop.f32.mrb[0].mxu0
  %v192 = vpop.f32.mrb[0].mxu0
  %193 = vdwg.mxu0
  %v194 = vld [vmem:[%s3] sm:$0xff]
  %v195 = vld [vmem:[%s3 + $0x8] sm:$0xff]
  %v196 = vld [vmem:[%s3 + $0x10] sm:$0xff]
  %198 = vset.pattern.permute.xlu0 0
  %199 = vperm.xlu0 %198, %v194
  %v200 = vpop.permute.xlu0 %199
  %203 = vset.pattern.permute.xlu0 0
  %204 = vperm.xlu0 %203, %v195
  %v205 = vpop.permute.xlu0 %204
  %208 = vset.pattern.permute.xlu0 0
  %209 = vperm.xlu0 %208, %v196
  %v210 = vpop.permute.xlu0 %209
  %v212 = vmul.f32 %v112, %v200
  %v213 = vmul.f32 %v114, %v200
  %v214 = vmul.f32 %v116, %v205
  %v215 = vmul.f32 %v118, %v205
  %v216 = vmul.f32 %v122, %v210
  %v217 = vmul.f32 %v124, %v210
  %v218 = vmul.f32 %v178, %v200
  %v219 = vmul.f32 %v180, %v200
  %v220 = vmul.f32 %v182, %v205
  %v221 = vmul.f32 %v184, %v205
  %v222 = vmul.f32 %v188, %v210
  %v223 = vmul.f32 %v190, %v210
  %v224 = vld [vmem:[%s4] sm:$0xff]
  %v225 = vld [vmem:[%s4 + $0x8] sm:$0xff]
  %v226 = vld [vmem:[%s4 + $0x10] sm:$0xff]
  %228 = vset.pattern.permute.xlu0 0
  %229 = vperm.xlu0 %228, %v224
  %v230 = vpop.permute.xlu0 %229
  %233 = vset.pattern.permute.xlu0 0
  %234 = vperm.xlu0 %233, %v225
  %v235 = vpop.permute.xlu0 %234
  %238 = vset.pattern.permute.xlu0 0
  %239 = vperm.xlu0 %238, %v226
  %v240 = vpop.permute.xlu0 %239
  %v242 = vadd.f32 %v212, %v230
  %v243 = vadd.f32 %v213, %v230
  %v244 = vadd.f32 %v214, %v235
  %v245 = vadd.f32 %v215, %v235
  %v246 = vadd.f32 %v216, %v240
  %v247 = vadd.f32 %v217, %v240
  %v248 = vadd.f32 %v218, %v230
  %v249 = vadd.f32 %v219, %v230
  %v250 = vadd.f32 %v220, %v235
  %v251 = vadd.f32 %v221, %v235
  %v252 = vadd.f32 %v222, %v240
  %v253 = vadd.f32 %v223, %v240
  %v254 = vmax.f32 %v242, 0.0
  %v255 = vmax.f32 %v243, 0.0
  %v256 = vmax.f32 %v248, 0.0
  %v257 = vmax.f32 %v249, 0.0
  %v258 = vpack.c.bf16 %v254, %v254
  %v259 = vpack.c.bf16 %v255, %v255
  %v260 = vpack.c.bf16 %v256, %v256
  %v261 = vpack.c.bf16 %v257, %v257
  %v262 = vld [vmem:[%s1] ss:$2 sm:$0x3]
  %s263 = scalar_lea.vmem %s1, 1
  %v264 = vld [vmem:[%s263] ss:$2 sm:$0x3]
  %vm265 = vcmp.ge.s32.totalorder %v262, 1
  %vm266 = vcmp.le.s32.totalorder %v262, 14
  %vm267 = vcmp.ge.s32.totalorder %v264, 1
  %vm268 = vcmp.le.s32.totalorder %v264, 14
  %271 = vrot.lane.b32.xlu0 %v259, 17
  %v272 = vpop.permute.xlu0 %271
  %273 = vrot.lane.b32.xlu0 %v261, 17
  %v274 = vpop.permute.xlu0 %273
  %277 = vrot.lane.b32.xlu0 %v258, 17
  %v278 = vpop.permute.xlu0 %277
  %279 = vrot.lane.b32.xlu0 %v260, 17
  %v280 = vpop.permute.xlu0 %279
  %vm281 = vcmask 138240
  %v282 = vsel %vm281, %v278, %v272
  %v283 = vsel %vm281, %v280, %v274
  %vm286 = vcmask 138240
  %v289 = vsel %vm286, %v272, %v278
  %v293 = vsel %vm286, %v274, %v280
  %vm295 = vmand %vm265, %vm267
  %v296 = vsel %vm295, 1, 0
  %v297 = vlaneseq
  %v298 = vshrl.u32 %v297, 7
  %v299 = vsub.s32 0, %v298
  %v300 = vrot.slane %v296, %v299
  %v301 = vlaneseq
  %v302 = vshrl.u32 %v301, 7
  %v303 = vsub.s32 1, %v302
  %v304 = vrot.slane %v296, %v303
  %vm305 = vcmp.eq.s32.totalorder %v300, 1
  %vm306 = vcmp.eq.s32.totalorder %v304, 1
  %vm307 = vmpackc.low %vm306, %vm305
  %v308 = vsel %vm307, 65537, 0
  %v309 = vlaneseq
  %v310 = vshrl.u32 %v309, 7
  %v311 = vsub.s32 0, %v310
  %v312 = vrot.slane %v308, %v311
  %v313 = vlaneseq
  %v314 = vshrl.u32 %v313, 7
  %v315 = vsub.s32 4, %v314
  %v316 = vrot.slane %v308, %v315
  %vm317 = vcmp.ne.s16.totalorder %v312, 0
  %vm318 = vcmp.ne.s16.totalorder %v316, 0
  %v319 = vsel %vm317, %v289, 0
  %v320 = vsel %vm318, %v282, 0
  %v321 = vsel %vm317, %v293, 0
  %v322 = vsel %vm318, %v283, 0
  %323 = vrot.lane.b32.xlu0 %v259, 16
  %v324 = vpop.permute.xlu0 %323
  %325 = vrot.lane.b32.xlu0 %v261, 16
  %v326 = vpop.permute.xlu0 %325
  %327 = vrot.lane.b32.xlu0 %v258, 16
  %v328 = vpop.permute.xlu0 %327
  %329 = vrot.lane.b32.xlu0 %v260, 16
  %v330 = vpop.permute.xlu0 %329
  %vm331 = vcmask 130048
  %v332 = vsel %vm331, %v328, %v324
  %v333 = vsel %vm331, %v330, %v326
  %vm336 = vcmask 130048
  %v339 = vsel %vm336, %v324, %v328
  %v343 = vsel %vm336, %v326, %v330
  %v345 = vsel %vm265, 1, 0
  %v346 = vlaneseq
  %v347 = vshrl.u32 %v346, 7
  %v348 = vsub.s32 0, %v347
  %v349 = vrot.slane %v345, %v348
  %v350 = vlaneseq
  %v351 = vshrl.u32 %v350, 7
  %v352 = vsub.s32 1, %v351
  %v353 = vrot.slane %v345, %v352
  %vm354 = vcmp.eq.s32.totalorder %v349, 1
  %vm355 = vcmp.eq.s32.totalorder %v353, 1
  %vm356 = vmpackc.low %vm355, %vm354
  %v357 = vsel %vm356, 65537, 0
  %v358 = vlaneseq
  %v359 = vshrl.u32 %v358, 7
  %v360 = vsub.s32 0, %v359
  %v361 = vrot.slane %v357, %v360
  %v362 = vlaneseq
  %v363 = vshrl.u32 %v362, 7
  %v364 = vsub.s32 4, %v363
  %v365 = vrot.slane %v357, %v364
  %vm366 = vcmp.ne.s16.totalorder %v361, 0
  %vm367 = vcmp.ne.s16.totalorder %v365, 0
  %v368 = vsel %vm366, %v339, 0
  %v369 = vsel %vm367, %v332, 0
  %v370 = vsel %vm366, %v343, 0
  %v371 = vsel %vm367, %v333, 0
  %372 = vrot.lane.b32.xlu0 %v259, 15
  %v373 = vpop.permute.xlu0 %372
  %374 = vrot.lane.b32.xlu0 %v261, 15
  %v375 = vpop.permute.xlu0 %374
  %376 = vrot.lane.b32.xlu0 %v258, 15
  %v377 = vpop.permute.xlu0 %376
  %378 = vrot.lane.b32.xlu0 %v260, 15
  %v379 = vpop.permute.xlu0 %378
  %vm380 = vcmask 121856
  %v381 = vsel %vm380, %v377, %v373
  %v382 = vsel %vm380, %v379, %v375
  %vm385 = vcmask 121856
  %v388 = vsel %vm385, %v373, %v377
  %v392 = vsel %vm385, %v375, %v379
  %vm394 = vmand %vm265, %vm268
  %v395 = vsel %vm394, 1, 0
  %v396 = vlaneseq
  %v397 = vshrl.u32 %v396, 7
  %v398 = vsub.s32 0, %v397
  %v399 = vrot.slane %v395, %v398
  %v400 = vlaneseq
  %v401 = vshrl.u32 %v400, 7
  %v402 = vsub.s32 1, %v401
  %v403 = vrot.slane %v395, %v402
  %vm404 = vcmp.eq.s32.totalorder %v399, 1
  %vm405 = vcmp.eq.s32.totalorder %v403, 1
  %vm406 = vmpackc.low %vm405, %vm404
  %v407 = vsel %vm406, 65537, 0
  %v408 = vlaneseq
  %v409 = vshrl.u32 %v408, 7
  %v410 = vsub.s32 0, %v409
  %v411 = vrot.slane %v407, %v410
  %v412 = vlaneseq
  %v413 = vshrl.u32 %v412, 7
  %v414 = vsub.s32 4, %v413
  %v415 = vrot.slane %v407, %v414
  %vm416 = vcmp.ne.s16.totalorder %v411, 0
  %vm417 = vcmp.ne.s16.totalorder %v415, 0
  %v418 = vsel %vm416, %v388, 0
  %v419 = vsel %vm417, %v381, 0
  %v420 = vsel %vm416, %v392, 0
  %v421 = vsel %vm417, %v382, 0
  %422 = vrot.lane.b32.xlu0 %v259, 1
  %v423 = vpop.permute.xlu0 %422
  %424 = vrot.lane.b32.xlu0 %v261, 1
  %v425 = vpop.permute.xlu0 %424
  %426 = vrot.lane.b32.xlu0 %v258, 1
  %v427 = vpop.permute.xlu0 %426
  %428 = vrot.lane.b32.xlu0 %v260, 1
  %v429 = vpop.permute.xlu0 %428
  %vm430 = vcmask 7168
  %v431 = vsel %vm430, %v427, %v423
  %v432 = vsel %vm430, %v429, %v425
  %vm435 = vcmask 7168
  %v438 = vsel %vm435, %v423, %v427
  %v442 = vsel %vm435, %v425, %v429
  %v444 = vsel %vm267, 1, 0
  %v445 = vlaneseq
  %v446 = vshrl.u32 %v445, 7
  %v447 = vsub.s32 0, %v446
  %v448 = vrot.slane %v444, %v447
  %v449 = vlaneseq
  %v450 = vshrl.u32 %v449, 7
  %v451 = vsub.s32 1, %v450
  %v452 = vrot.slane %v444, %v451
  %vm453 = vcmp.eq.s32.totalorder %v448, 1
  %vm454 = vcmp.eq.s32.totalorder %v452, 1
  %vm455 = vmpackc.low %vm454, %vm453
  %v456 = vsel %vm455, 65537, 0
  %v457 = vlaneseq
  %v458 = vshrl.u32 %v457, 7
  %v459 = vsub.s32 0, %v458
  %v460 = vrot.slane %v456, %v459
  %v461 = vlaneseq
  %v462 = vshrl.u32 %v461, 7
  %v463 = vsub.s32 4, %v462
  %v464 = vrot.slane %v456, %v463
  %vm465 = vcmp.ne.s16.totalorder %v460, 0
  %vm466 = vcmp.ne.s16.totalorder %v464, 0
  %v467 = vsel %vm465, %v438, 0
  %v468 = vsel %vm466, %v431, 0
  %v469 = vsel %vm465, %v442, 0
  %v470 = vsel %vm466, %v432, 0
  %471 = vrot.lane.b32.xlu0 %v258, 127
  %v472 = vpop.permute.xlu0 %471
  %473 = vrot.lane.b32.xlu0 %v259, 127
  %v474 = vpop.permute.xlu0 %473
  %475 = vrot.lane.b32.xlu0 %v260, 127
  %v476 = vpop.permute.xlu0 %475
  %477 = vrot.lane.b32.xlu0 %v261, 127
  %v478 = vpop.permute.xlu0 %477
  %vm479 = vcmask 1039360
  %v480 = vsel %vm479, %v472, %v474
  %v481 = vsel %vm479, %v476, %v478
  %vm484 = vcmask 1039360
  %v487 = vsel %vm484, %v474, %v472
  %v491 = vsel %vm484, %v478, %v476
  %v493 = vsel %vm268, 1, 0
  %v494 = vlaneseq
  %v495 = vshrl.u32 %v494, 7
  %v496 = vsub.s32 0, %v495
  %v497 = vrot.slane %v493, %v496
  %v498 = vlaneseq
  %v499 = vshrl.u32 %v498, 7
  %v500 = vsub.s32 1, %v499
  %v501 = vrot.slane %v493, %v500
  %vm502 = vcmp.eq.s32.totalorder %v497, 1
  %vm503 = vcmp.eq.s32.totalorder %v501, 1
  %vm504 = vmpackc.low %vm503, %vm502
  %v505 = vsel %vm504, 65537, 0
  %v506 = vlaneseq
  %v507 = vshrl.u32 %v506, 7
  %v508 = vsub.s32 0, %v507
  %v509 = vrot.slane %v505, %v508
  %v510 = vlaneseq
  %v511 = vshrl.u32 %v510, 7
  %v512 = vsub.s32 4, %v511
  %v513 = vrot.slane %v505, %v512
  %vm514 = vcmp.ne.s16.totalorder %v509, 0
  %vm515 = vcmp.ne.s16.totalorder %v513, 0
  %v516 = vsel %vm514, %v480, 0
  %v517 = vsel %vm515, %v487, 0
  %v518 = vsel %vm514, %v481, 0
  %v519 = vsel %vm515, %v491, 0
  %520 = vrot.lane.b32.xlu0 %v258, 113
  %v521 = vpop.permute.xlu0 %520
  %522 = vrot.lane.b32.xlu0 %v259, 113
  %v523 = vpop.permute.xlu0 %522
  %524 = vrot.lane.b32.xlu0 %v260, 113
  %v525 = vpop.permute.xlu0 %524
  %526 = vrot.lane.b32.xlu0 %v261, 113
  %v527 = vpop.permute.xlu0 %526
  %vm528 = vcmask 924672
  %v529 = vsel %vm528, %v521, %v523
  %v530 = vsel %vm528, %v525, %v527
  %vm533 = vcmask 924672
  %v536 = vsel %vm533, %v523, %v521
  %v540 = vsel %vm533, %v527, %v525
  %vm542 = vmand %vm266, %vm267
  %v543 = vsel %vm542, 1, 0
  %v544 = vlaneseq
  %v545 = vshrl.u32 %v544, 7
  %v546 = vsub.s32 0, %v545
  %v547 = vrot.slane %v543, %v546
  %v548 = vlaneseq
  %v549 = vshrl.u32 %v548, 7
  %v550 = vsub.s32 1, %v549
  %v551 = vrot.slane %v543, %v550
  %vm552 = vcmp.eq.s32.totalorder %v547, 1
  %vm553 = vcmp.eq.s32.totalorder %v551, 1
  %vm554 = vmpackc.low %vm553, %vm552
  %v555 = vsel %vm554, 65537, 0
  %v556 = vlaneseq
  %v557 = vshrl.u32 %v556, 7
  %v558 = vsub.s32 0, %v557
  %v559 = vrot.slane %v555, %v558
  %v560 = vlaneseq
  %v561 = vshrl.u32 %v560, 7
  %v562 = vsub.s32 4, %v561
  %v563 = vrot.slane %v555, %v562
  %vm564 = vcmp.ne.s16.totalorder %v559, 0
  %vm565 = vcmp.ne.s16.totalorder %v563, 0
  %v566 = vsel %vm564, %v529, 0
  %v567 = vsel %vm565, %v536, 0
  %v568 = vsel %vm564, %v530, 0
  %v569 = vsel %vm565, %v540, 0
  %570 = vrot.lane.b32.xlu0 %v258, 112
  %v571 = vpop.permute.xlu0 %570
  %572 = vrot.lane.b32.xlu0 %v259, 112
  %v573 = vpop.permute.xlu0 %572
  %574 = vrot.lane.b32.xlu0 %v260, 112
  %v575 = vpop.permute.xlu0 %574
  %576 = vrot.lane.b32.xlu0 %v261, 112
  %v577 = vpop.permute.xlu0 %576
  %vm578 = vcmask 916480
  %v579 = vsel %vm578, %v571, %v573
  %v580 = vsel %vm578, %v575, %v577
  %vm583 = vcmask 916480
  %v586 = vsel %vm583, %v573, %v571
  %v590 = vsel %vm583, %v577, %v575
  %v592 = vsel %vm266, 1, 0
  %v593 = vlaneseq
  %v594 = vshrl.u32 %v593, 7
  %v595 = vsub.s32 0, %v594
  %v596 = vrot.slane %v592, %v595
  %v597 = vlaneseq
  %v598 = vshrl.u32 %v597, 7
  %v599 = vsub.s32 1, %v598
  %v600 = vrot.slane %v592, %v599
  %vm601 = vcmp.eq.s32.totalorder %v596, 1
  %vm602 = vcmp.eq.s32.totalorder %v600, 1
  %vm603 = vmpackc.low %vm602, %vm601
  %v604 = vsel %vm603, 65537, 0
  %v605 = vlaneseq
  %v606 = vshrl.u32 %v605, 7
  %v607 = vsub.s32 0, %v606
  %v608 = vrot.slane %v604, %v607
  %v609 = vlaneseq
  %v610 = vshrl.u32 %v609, 7
  %v611 = vsub.s32 4, %v610
  %v612 = vrot.slane %v604, %v611
  %vm613 = vcmp.ne.s16.totalorder %v608, 0
  %vm614 = vcmp.ne.s16.totalorder %v612, 0
  %v615 = vsel %vm613, %v579, 0
  %v616 = vsel %vm614, %v586, 0
  %v617 = vsel %vm613, %v580, 0
  %v618 = vsel %vm614, %v590, 0
  %619 = vrot.lane.b32.xlu0 %v258, 111
  %v620 = vpop.permute.xlu0 %619
  %621 = vrot.lane.b32.xlu0 %v259, 111
  %v622 = vpop.permute.xlu0 %621
  %623 = vrot.lane.b32.xlu0 %v260, 111
  %v624 = vpop.permute.xlu0 %623
  %625 = vrot.lane.b32.xlu0 %v261, 111
  %v626 = vpop.permute.xlu0 %625
  %vm627 = vcmask 908288
  %v628 = vsel %vm627, %v620, %v622
  %v629 = vsel %vm627, %v624, %v626
  %vm632 = vcmask 908288
  %v635 = vsel %vm632, %v622, %v620
  %v639 = vsel %vm632, %v626, %v624
  %vm641 = vmand %vm266, %vm268
  %v642 = vsel %vm641, 1, 0
  %v643 = vlaneseq
  %v644 = vshrl.u32 %v643, 7
  %v645 = vsub.s32 0, %v644
  %v646 = vrot.slane %v642, %v645
  %v647 = vlaneseq
  %v648 = vshrl.u32 %v647, 7
  %v649 = vsub.s32 1, %v648
  %v650 = vrot.slane %v642, %v649
  %vm651 = vcmp.eq.s32.totalorder %v646, 1
  %vm652 = vcmp.eq.s32.totalorder %v650, 1
  %vm653 = vmpackc.low %vm652, %vm651
  %v654 = vsel %vm653, 65537, 0
  %v655 = vlaneseq
  %v656 = vshrl.u32 %v655, 7
  %v657 = vsub.s32 0, %v656
  %v658 = vrot.slane %v654, %v657
  %v659 = vlaneseq
  %v660 = vshrl.u32 %v659, 7
  %v661 = vsub.s32 4, %v660
  %v662 = vrot.slane %v654, %v661
  %vm663 = vcmp.ne.s16.totalorder %v658, 0
  %vm664 = vcmp.ne.s16.totalorder %v662, 0
  %v665 = vsel %vm663, %v628, 0
  %v666 = vsel %vm664, %v635, 0
  %v667 = vsel %vm663, %v629, 0
  %v668 = vsel %vm664, %v639, 0
  %v673 = vrot.slane %v368, 4
  %v674 = vrot.slane %v369, 4
  %v675 = vrot.slane %v370, 4
  %v676 = vrot.slane %v371, 4
  %v681 = vrot.slane %v467, 4
  %v682 = vrot.slane %v468, 4
  %v683 = vrot.slane %v469, 4
  %v684 = vrot.slane %v470, 4
  %v689 = vrot.slane %v516, 4
  %v690 = vrot.slane %v517, 4
  %v691 = vrot.slane %v518, 4
  %v692 = vrot.slane %v519, 4
  %v697 = vrot.slane %v615, 4
  %v698 = vrot.slane %v616, 4
  %v699 = vrot.slane %v617, 4
  %v700 = vrot.slane %v618, 4
  %vm701 = vcmask 1043456
  %v704 = vsel %vm701, %v319, %v673
  %v708 = vsel %vm701, %v320, %v674
  %v712 = vsel %vm701, %v321, %v675
  %v716 = vsel %vm701, %v322, %v676
  %v720 = vsel %vm701, %v418, %v681
  %v724 = vsel %vm701, %v419, %v682
  %v728 = vsel %vm701, %v420, %v683
  %v732 = vsel %vm701, %v421, %v684
  %v736 = vsel %vm701, %v258, %v689
  %v740 = vsel %vm701, %v259, %v690
  %v744 = vsel %vm701, %v260, %v691
  %v748 = vsel %vm701, %v261, %v692
  %v752 = vsel %vm701, %v566, %v697
  %v756 = vsel %vm701, %v567, %v698
  %v760 = vsel %vm701, %v568, %v699
  %v764 = vsel %vm701, %v569, %v700
  %v766 = vld [vmem:[%s5] sm:$0xf]
  %vm767 = vcmask 588800
  %v769 = vsel %vm767, %v766, 0
  %v772 = vsel %vm701, %v665, 0
  %v775 = vsel %vm701, %v666, 0
  %777 = vmatprep.subr.bf16.mxu0 %v708
  %778 = vmatpush1.bf16.msra.mxu0 %v704
  %779 = vmatprep.subr.bf16.mxu0 %v724
  %780 = vmatpush1.bf16.msra.mxu0 %v720
  %781 = vmatprep.subr.bf16.mxu0 %v740
  %782 = vmatpush1.bf16.msra.mxu0 %v736
  %783 = vmatprep.subr.bf16.mxu0 %v756
  %784 = vmatpush1.bf16.msra.mxu0 %v752
  %785 = vmatprep.subr.bf16.mxu0 %v775
  %786 = vmatpush1.bf16.msra.mxu0 %v772
  %787 = vmatprep.subr.bf16.mxu0 0
  %788 = vmatpush1.bf16.msra.mxu0 0
  %789 = vmatprep.subr.bf16.mxu0 0
  %790 = vmatpush1.bf16.msra.mxu0 0
  %791 = vmatprep.subr.bf16.mxu0 0
  %792 = vmatpush1.bf16.msra.mxu0 0
  %793 = vmatprep.subr.bf16.mxu0 0
  %794 = vmatpush1.bf16.msra.mxu0 0
  %795 = vmatprep.subr.bf16.mxu0 0
  %796 = vmatpush1.bf16.msra.mxu0 0
  %797 = vmatprep.subr.bf16.mxu0 0
  %798 = vmatpush1.bf16.msra.mxu0 0
  %799 = vmatprep.subr.bf16.mxu0 0
  %800 = vmatpush1.bf16.msra.mxu0 0
  %801 = vmatprep.subr.bf16.mxu0 0
  %802 = vmatpush1.bf16.msra.mxu0 0
  %803 = vmatprep.subr.bf16.mxu0 0
  %804 = vmatpush1.bf16.msra.mxu0 0
  %805 = vmatprep.subr.bf16.mxu0 0
  %806 = vmatpush1.bf16.msra.mxu0 0
  %807 = vmatprep.subr.bf16.mxu0 0
  %808 = vmatpush1.bf16.msra.mxu0 0
  %809 = vmatprep.mubr.bf16.mxu0 0
  %810 = vmatmul.mubr.bf16.gmra.mrb[0].mxu0 %v769
  %v811 = vpop.f32.mrb[0].mxu0
  %v812 = vadd.f32 0.0, %v811
  %v813 = vpop.f32.mrb[0].mxu0
  %v814 = vadd.f32 0.0, %v813
  %v815 = vpop.f32.mrb[0].mxu0
  %v816 = vpop.f32.mrb[0].mxu0
  %817 = vdwg.mxu0
  %v819 = vsel %vm701, %v667, 0
  %v822 = vsel %vm701, %v668, 0
  %824 = vmatprep.subr.bf16.mxu0 %v716
  %825 = vmatpush1.bf16.msra.mxu0 %v712
  %826 = vmatprep.subr.bf16.mxu0 %v732
  %827 = vmatpush1.bf16.msra.mxu0 %v728
  %828 = vmatprep.subr.bf16.mxu0 %v748
  %829 = vmatpush1.bf16.msra.mxu0 %v744
  %830 = vmatprep.subr.bf16.mxu0 %v764
  %831 = vmatpush1.bf16.msra.mxu0 %v760
  %832 = vmatprep.subr.bf16.mxu0 %v822
  %833 = vmatpush1.bf16.msra.mxu0 %v819
  %834 = vmatprep.subr.bf16.mxu0 0
  %835 = vmatpush1.bf16.msra.mxu0 0
  %836 = vmatprep.subr.bf16.mxu0 0
  %837 = vmatpush1.bf16.msra.mxu0 0
  %838 = vmatprep.subr.bf16.mxu0 0
  %839 = vmatpush1.bf16.msra.mxu0 0
  %840 = vmatprep.subr.bf16.mxu0 0
  %841 = vmatpush1.bf16.msra.mxu0 0
  %842 = vmatprep.subr.bf16.mxu0 0
  %843 = vmatpush1.bf16.msra.mxu0 0
  %844 = vmatprep.subr.bf16.mxu0 0
  %845 = vmatpush1.bf16.msra.mxu0 0
  %846 = vmatprep.subr.bf16.mxu0 0
  %847 = vmatpush1.bf16.msra.mxu0 0
  %848 = vmatprep.subr.bf16.mxu0 0
  %849 = vmatpush1.bf16.msra.mxu0 0
  %850 = vmatprep.subr.bf16.mxu0 0
  %851 = vmatpush1.bf16.msra.mxu0 0
  %852 = vmatprep.subr.bf16.mxu0 0
  %853 = vmatpush1.bf16.msra.mxu0 0
  %854 = vmatprep.subr.bf16.mxu0 0
  %855 = vmatpush1.bf16.msra.mxu0 0
  %856 = vmatprep.mubr.bf16.mxu0 0
  %857 = vmatmul.mubr.bf16.gmra.mrb[0].mxu0 %v769
  %v858 = vpop.f32.mrb[0].mxu0
  %v859 = vadd.f32 0.0, %v858
  %v860 = vpop.f32.mrb[0].mxu0
  %v861 = vadd.f32 0.0, %v860
  %v862 = vpop.f32.mrb[0].mxu0
  %v863 = vpop.f32.mrb[0].mxu0
  %864 = vdwg.mxu0
  %v865 = vld [vmem:[%s6] sm:$0xff]
  %867 = vset.pattern.permute.xlu0 0
  %868 = vperm.xlu0 %867, %v865
  %v869 = vpop.permute.xlu0 %868
  %v871 = vmul.f32 %v812, %v869
  %v872 = vmul.f32 %v814, %v869
  %v873 = vmul.f32 %v859, %v869
  %v874 = vmul.f32 %v861, %v869
  %v875 = vld [vmem:[%s7] sm:$0xff]
  %877 = vset.pattern.permute.xlu0 0
  %878 = vperm.xlu0 %877, %v875
  %v879 = vpop.permute.xlu0 %878
  %v881 = vadd.f32 %v871, %v879
  %v882 = vadd.f32 %v872, %v879
  %v883 = vadd.f32 %v873, %v879
  %v884 = vadd.f32 %v874, %v879
  %v885 = vmax.f32 %v881, 0.0
  %v886 = vmax.f32 %v882, 0.0
  %v887 = vmax.f32 %v883, 0.0
  %v888 = vmax.f32 %v884, 0.0
  %v889 = vpack.c.bf16 %v885, %v885
  %v890 = vpack.c.bf16 %v886, %v886
  %v891 = vpack.c.bf16 %v887, %v887
  %v892 = vpack.c.bf16 %v888, %v888
  %v893 = vld [vmem:[%s8] sm:$0xf]
  %v894 = vld [vmem:[%s8 + $0x4] sm:$0xf]
  %v897 = vunpack.c.l.b16 %v893
  %v898 = vunpack.c.l.b16 %v894
  %v899 = vpack.c.b16 %v898, %v897
  %vm900 = vcmask 64512
  %v902 = vsel %vm900, %v899, 0
  %v905 = vsel %vm701, %v889, 0
  %v908 = vsel %vm701, %v890, 0
  %910 = vmatprep.subr.bf16.mxu0 %v908
  %911 = vmatpush1.bf16.msra.mxu0 %v905
  %912 = vmatprep.subr.bf16.mxu0 0
  %913 = vmatpush1.bf16.msra.mxu0 0
  %914 = vmatprep.subr.bf16.mxu0 0
  %915 = vmatpush1.bf16.msra.mxu0 0
  %916 = vmatprep.subr.bf16.mxu0 0
  %917 = vmatpush1.bf16.msra.mxu0 0
  %918 = vmatprep.subr.bf16.mxu0 0
  %919 = vmatpush1.bf16.msra.mxu0 0
  %920 = vmatprep.subr.bf16.mxu0 0
  %921 = vmatpush1.bf16.msra.mxu0 0
  %922 = vmatprep.subr.bf16.mxu0 0
  %923 = vmatpush1.bf16.msra.mxu0 0
  %924 = vmatprep.subr.bf16.mxu0 0
  %925 = vmatpush1.bf16.msra.mxu0 0
  %926 = vmatprep.subr.bf16.mxu0 0
  %927 = vmatpush1.bf16.msra.mxu0 0
  %928 = vmatprep.subr.bf16.mxu0 0
  %929 = vmatpush1.bf16.msra.mxu0 0
  %930 = vmatprep.subr.bf16.mxu0 0
  %931 = vmatpush1.bf16.msra.mxu0 0
  %932 = vmatprep.subr.bf16.mxu0 0
  %933 = vmatpush1.bf16.msra.mxu0 0
  %934 = vmatprep.subr.bf16.mxu0 0
  %935 = vmatpush1.bf16.msra.mxu0 0
  %936 = vmatprep.subr.bf16.mxu0 0
  %937 = vmatpush1.bf16.msra.mxu0 0
  %938 = vmatprep.subr.bf16.mxu0 0
  %939 = vmatpush1.bf16.msra.mxu0 0
  %940 = vmatprep.subr.bf16.mxu0 0
  %941 = vmatpush1.bf16.msra.mxu0 0
  %942 = vmatprep.mubr.bf16.mxu0 0
  %943 = vmatmul.mubr.bf16.gmra.mrb[0].mxu0 %v902
  %v944 = vpop.f32.mrb[0].mxu0
  %v945 = vadd.f32 0.0, %v944
  %v946 = vpop.f32.mrb[0].mxu0
  %v947 = vadd.f32 0.0, %v946
  %v948 = vpop.f32.mrb[0].mxu0
  %v949 = vadd.f32 0.0, %v948
  %v950 = vpop.f32.mrb[0].mxu0
  %v951 = vadd.f32 0.0, %v950
  %952 = vdwg.mxu0
  %v954 = vsel %vm701, %v891, 0
  %v957 = vsel %vm701, %v892, 0
  %959 = vmatprep.subr.bf16.mxu0 %v957
  %960 = vmatpush1.bf16.msra.mxu0 %v954
  %961 = vmatprep.subr.bf16.mxu0 0
  %962 = vmatpush1.bf16.msra.mxu0 0
  %963 = vmatprep.subr.bf16.mxu0 0
  %964 = vmatpush1.bf16.msra.mxu0 0
  %965 = vmatprep.subr.bf16.mxu0 0
  %966 = vmatpush1.bf16.msra.mxu0 0
  %967 = vmatprep.subr.bf16.mxu0 0
  %968 = vmatpush1.bf16.msra.mxu0 0
  %969 = vmatprep.subr.bf16.mxu0 0
  %970 = vmatpush1.bf16.msra.mxu0 0
  %971 = vmatprep.subr.bf16.mxu0 0
  %972 = vmatpush1.bf16.msra.mxu0 0
  %973 = vmatprep.subr.bf16.mxu0 0
  %974 = vmatpush1.bf16.msra.mxu0 0
  %975 = vmatprep.subr.bf16.mxu0 0
  %976 = vmatpush1.bf16.msra.mxu0 0
  %977 = vmatprep.subr.bf16.mxu0 0
  %978 = vmatpush1.bf16.msra.mxu0 0
  %979 = vmatprep.subr.bf16.mxu0 0
  %980 = vmatpush1.bf16.msra.mxu0 0
  %981 = vmatprep.subr.bf16.mxu0 0
  %982 = vmatpush1.bf16.msra.mxu0 0
  %983 = vmatprep.subr.bf16.mxu0 0
  %984 = vmatpush1.bf16.msra.mxu0 0
  %985 = vmatprep.subr.bf16.mxu0 0
  %986 = vmatpush1.bf16.msra.mxu0 0
  %987 = vmatprep.subr.bf16.mxu0 0
  %988 = vmatpush1.bf16.msra.mxu0 0
  %989 = vmatprep.subr.bf16.mxu0 0
  %990 = vmatpush1.bf16.msra.mxu0 0
  %991 = vmatprep.mubr.bf16.mxu0 0
  %992 = vmatmul.mubr.bf16.gmra.mrb[0].mxu0 %v902
  %v993 = vpop.f32.mrb[0].mxu0
  %v994 = vadd.f32 0.0, %v993
  %v995 = vpop.f32.mrb[0].mxu0
  %v996 = vadd.f32 0.0, %v995
  %v997 = vpop.f32.mrb[0].mxu0
  %v998 = vadd.f32 0.0, %v997
  %v999 = vpop.f32.mrb[0].mxu0
  %v1000 = vadd.f32 0.0, %v999
  %1001 = vdwg.mxu0
  %v1002 = vld [vmem:[%s9] sm:$0xff]
  %v1003 = vld [vmem:[%s9 + $0x8] sm:$0xff]
  %1005 = vset.pattern.permute.xlu0 0
  %1006 = vperm.xlu0 %1005, %v1002
  %v1007 = vpop.permute.xlu0 %1006
  %1010 = vset.pattern.permute.xlu0 0
  %1011 = vperm.xlu0 %1010, %v1003
  %v1012 = vpop.permute.xlu0 %1011
  %v1014 = vmul.f32 %v945, %v1007
  %v1015 = vmul.f32 %v947, %v1007
  %v1016 = vmul.f32 %v949, %v1012
  %v1017 = vmul.f32 %v951, %v1012
  %v1018 = vmul.f32 %v994, %v1007
  %v1019 = vmul.f32 %v996, %v1007
  %v1020 = vmul.f32 %v998, %v1012
  %v1021 = vmul.f32 %v1000, %v1012
  %v1022 = vld [vmem:[%s10] sm:$0xff]
  %v1023 = vld [vmem:[%s10 + $0x8] sm:$0xff]
  %1025 = vset.pattern.permute.xlu0 0
  %1026 = vperm.xlu0 %1025, %v1022
  %v1027 = vpop.permute.xlu0 %1026
  %1030 = vset.pattern.permute.xlu0 0
  %1031 = vperm.xlu0 %1030, %v1023
  %v1032 = vpop.permute.xlu0 %1031
  %v1034 = vadd.f32 %v1014, %v1027
  %v1035 = vadd.f32 %v1015, %v1027
  %v1036 = vadd.f32 %v1016, %v1032
  %v1037 = vadd.f32 %v1017, %v1032
  %v1038 = vadd.f32 %v1018, %v1027
  %v1039 = vadd.f32 %v1019, %v1027
  %v1040 = vadd.f32 %v1020, %v1032
  %v1041 = vadd.f32 %v1021, %v1032
  %v1042 = vadd.f32 %v1034, %v244
  %v1043 = vadd.f32 %v1035, %v245
  %v1044 = vadd.f32 %v1036, %v246
  %v1045 = vadd.f32 %v1037, %v247
  %v1046 = vadd.f32 %v1038, %v250
  %v1047 = vadd.f32 %v1039, %v251
  %v1048 = vadd.f32 %v1040, %v252
  %v1049 = vadd.f32 %v1041, %v253
  %v1050 = vmax.f32 %v1042, 0.0
  %v1051 = vmax.f32 %v1043, 0.0
  %v1052 = vmax.f32 %v1044, 0.0
  %v1053 = vmax.f32 %v1045, 0.0
  %v1054 = vmax.f32 %v1046, 0.0
  %v1055 = vmax.f32 %v1047, 0.0
  %v1056 = vmax.f32 %v1048, 0.0
  %v1057 = vmax.f32 %v1049, 0.0
  %1058 = vst [vmem:[%s11] sm:$0xff] %v1050
  %1059 = vst [vmem:[%s11 + $0x8] sm:$0xff] %v1051
  %1060 = vst [vmem:[%s11 + $0x10] sm:$0xff] %v1052
  %1061 = vst [vmem:[%s11 + $0x18] sm:$0xff] %v1053
  %1062 = vst [vmem:[%s11 + $0x20] sm:$0xff] %v1054
  %1063 = vst [vmem:[%s11 + $0x28] sm:$0xff] %v1055
  %1064 = vst [vmem:[%s11 + $0x30] sm:$0xff] %v1056
  %1065 = vst [vmem:[%s11 + $0x38] sm:$0xff] %v1057
  // Predicated region
  $region46: #{conv_block.1} parent=0 // pred_check
    _
  $region47: #{conv_block.1} parent=0 // pred_check_branch
    %1067 = sbr.rel (0) target = $region49
  $region48: #{conv_block.1} parent=0 // pred_region
    _
  $region49: #{conv_block.1} parent=0 // pred_fallthru
    _
  // Predicated region
  $region50: #{conv_block.1} parent=0 // pred_check
    _
  $region51: #{conv_block.1} parent=0 // pred_check_branch
    %1069 = sbr.rel (0) target = $region53
  $region52: #{conv_block.1} parent=0 // pred_region
    _
  $region53: #{conv_block.1} parent=0 // pred_fallthru
    _

</llo_original>
